<compile_context>
chip_gen: v7x
topology: tpu7x:2x2x1
jax: 0.10.0
libtpu: 0.0.40
codegen_flags: <defaults>
</compile_context>

<pallas_src>
import jax
import jax.numpy as jnp
from jax.experimental import pallas as pl
from jax.experimental.pallas import tpu as pltpu


def _embed_kernel(rows_ref, w_ref, pos_ref, o_ref):
    # rows_ref: (1, TT, K) bf16  token rows (row 0 of each batch is all-zero -> cls slot)
    # w_ref:    (K, H)     bf16  conv weight as matmul weight (VMEM-resident)
    # pos_ref:  (1, TT, H) f32   position embeddings (+ conv bias folded; cls+pos0 in row 0)
    # o_ref:    (1, TT, H) f32
    acc = jnp.dot(rows_ref[0], w_ref[...], preferred_element_type=jnp.float32)
    o_ref[0] = (acc + pos_ref[0]).astype(o_ref.dtype)


def _choose_token_tile(T, max_tile=512):
    """Largest multiple-of-8 divisor of T that is <= max_tile; else the full axis
    (a block equal to the full array dim is always legal)."""
    t = (min(T, max_tile) // 8) * 8
    while t >= 8:
        if T % t == 0:
            return t
        t -= 8
    return T


def fused_patch_embed(rows_bf16, w_bf16, pos_all, out_dtype=jnp.float32):
    """rows_bf16: (B, T, K) bf16; w_bf16: (K, H) bf16; pos_all: (1, T, H) f32."""
    B, T, K = rows_bf16.shape
    H = w_bf16.shape[1]
    TT = _choose_token_tile(T)
    grid = (B, T // TT)
    return pl.pallas_call(
        _embed_kernel,
        out_shape=jax.ShapeDtypeStruct((B, T, H), out_dtype),
        grid_spec=pltpu.PrefetchScalarGridSpec(
            num_scalar_prefetch=0,
            grid=grid,
            in_specs=[
                pl.BlockSpec((1, TT, K), lambda b, j: (b, j, 0)),
                pl.BlockSpec((K, H), lambda b, j: (0, 0)),       # stays VMEM-resident
                pl.BlockSpec((1, TT, H), lambda b, j: (0, j, 0)),
            ],
            out_specs=pl.BlockSpec((1, TT, H), lambda b, j: (b, j, 0)),
        ),
        compiler_params=pltpu.CompilerParams(
            dimension_semantics=("parallel", "parallel"),
        ),
    )(rows_bf16, w_bf16, pos_all)


def embeddings_forward(x_nchw, params):
    """Embeddings forward (non-overlap split, eval-mode dropout).

    x_nchw: (B, C, H, W) float32
    returns (embeddings (B, n_patches+1, hidden) f32, struc_tokens (B, 1, hidden))
    """
    conv_w = params["conv_w"]          # (hidden, C, ph, pw)  PyTorch Conv2d layout
    conv_b = params["conv_b"]          # (hidden,)
    pos_emb = params["pos_emb"]        # (1, n_patches+1, hidden)
    cls_tok = params["cls_token"]      # (1, 1, hidden)
    struc_tok = params["struc_token"]  # (1, 1, hidden)

    B, C, Himg, Wimg = x_nchw.shape
    hidden, _, ph, pw = conv_w.shape
    gh, gw = Himg // ph, Wimg // pw
    n_patches = gh * gw

    # --- glue: non-overlapping patch extraction (== strided-conv im2col) ---
    # TODO(synk): the (0,2,4,1,3,5) transpose is a wrapper-side XLA op (one extra
    # HBM pass over the input); fusing it into the kernel via a 6-D BlockSpec is
    # possible but not done here.
    xp = x_nchw.reshape(B, C, gh, ph, gw, pw)
    xp = jnp.transpose(xp, (0, 2, 4, 1, 3, 5)).reshape(B, n_patches, C * ph * pw)

    # Prepend one all-zero row per batch element: its matmul output is exactly 0,
    # so the cls token lands in that row via the position-embedding add. This
    # fuses torch.cat((cls_tokens, x), 1) into the kernel.
    rows = jnp.pad(xp, ((0, 0), (1, 0), (0, 0))).astype(jnp.bfloat16)   # (B, T, K)

    # Conv weight -> matmul weight, bf16 for the MXU.
    w_mat = jnp.transpose(conv_w.reshape(hidden, C * ph * pw)).astype(jnp.bfloat16)

    # Position embeddings with conv bias folded in; row 0 carries cls + pos[0].
    pos_all = jnp.concatenate(
        [cls_tok + pos_emb[:, :1, :],
         pos_emb[:, 1:, :] + conv_b.reshape(1, 1, hidden)],
        axis=1)                                                         # (1, T, H) f32

    embeddings = fused_patch_embed(rows, w_mat, pos_all)

    # Dropout: eval-mode identity.
    struc_tokens = jnp.broadcast_to(struc_tok, (B, 1, hidden))
    return embeddings, struc_tokens


def _reference_forward(x_nchw, params):
    """Pure-JAX f32 reference (conv_general_dilated) for correctness check."""
    conv_w, conv_b = params["conv_w"], params["conv_b"]
    pos_emb, cls_tok, struc_tok = params["pos_emb"], params["cls_token"], params["struc_token"]
    hidden, C, ph, pw = conv_w.shape
    B = x_nchw.shape[0]
    y = jax.lax.conv_general_dilated(
        x_nchw, conv_w, window_strides=(ph, pw), padding="VALID",
        dimension_numbers=("NCHW", "OIHW", "NCHW"))
    y = y + conv_b.reshape(1, hidden, 1, 1)
    y = y.reshape(B, hidden, -1).transpose(0, 2, 1)   # (B, n_patches, hidden)
    cls_rows = jnp.broadcast_to(cls_tok, (B, 1, hidden))
    emb = jnp.concatenate([cls_rows, y], axis=1) + pos_emb
    return emb, jnp.broadcast_to(struc_tok, (B, 1, hidden))


if __name__ == "__main__":
    # small config: img=16, patch=4, in_channels=3, hidden=128 (lane-dense), batch=2
    B, C, IMG, PATCH, HIDDEN = 2, 3, 16, 4, 128
    n_patches = (IMG // PATCH) * (IMG // PATCH)

    key = jax.random.PRNGKey(0)
    k_x, k_w, k_b, k_pos, k_cls, k_struc = jax.random.split(key, 6)

    x = jax.random.normal(k_x, (B, C, IMG, IMG), dtype=jnp.float32)
    params = {
        "conv_w": jax.random.normal(k_w, (HIDDEN, C, PATCH, PATCH), jnp.float32) * 0.02,
        "conv_b": jax.random.normal(k_b, (HIDDEN,), jnp.float32) * 0.02,
        "pos_emb": jax.random.normal(k_pos, (1, n_patches + 1, HIDDEN), jnp.float32) * 0.02,
        "cls_token": jax.random.normal(k_cls, (1, 1, HIDDEN), jnp.float32) * 0.02,
        "struc_token": jax.random.normal(k_struc, (1, 1, HIDDEN), jnp.float32) * 0.02,
    }

    fwd = jax.jit(embeddings_forward)
    emb, struc = fwd(x, params)
    emb = jax.block_until_ready(emb)
    struc = jax.block_until_ready(struc)

    ref_emb, ref_struc = _reference_forward(x, params)
    assert emb.shape == (B, n_patches + 1, HIDDEN)
    assert struc.shape == (B, 1, HIDDEN)
    # bf16 MXU inputs -> compare against the f32 conv reference at bf16 tolerance.
    max_err = float(jnp.max(jnp.abs(emb - ref_emb)))
    assert jnp.allclose(emb, ref_emb, atol=2e-2, rtol=2e-2), max_err
    assert jnp.allclose(struc, ref_struc)

    # TODO(synk): training-mode dropout not implemented (eval-mode identity only).
    print("KERNEL_OK")
</pallas_src>

<mosaic_0001>
module attributes {stable_mosaic.version = 11 : i64} {
  func.func @_embed_kernel(%arg0: i32, %arg1: i32, %arg2: memref<1x17x48xbf16, #tpu.memory_space<vmem>>, %arg3: memref<48x128xbf16, #tpu.memory_space<vmem>>, %arg4: memref<1x17x128xf32, #tpu.memory_space<vmem>>, %arg5: memref<1x17x128xf32, #tpu.memory_space<vmem>>) attributes {dimension_semantics = [#tpu.dimension_semantics<parallel>, #tpu.dimension_semantics<parallel>], iteration_bounds = array<i64: 2, 1>, scalar_prefetch = 0 : i64, scratch_operands = 0 : i64, tpu.core_type = #tpu.core_type<tc>, window_params = [{transform_indices = @transform_0, window_bounds = array<i64: 1, 17, 48>}, {pipeline_mode = #tpu.pipeline_mode<synchronous>, transform_indices = @transform_1, window_bounds = array<i64: 48, 128>}, {transform_indices = @transform_2, window_bounds = array<i64: 1, 17, 128>}, {transform_indices = @transform_3, window_bounds = array<i64: 1, 17, 128>}]} {
    %c0 = arith.constant 0 : index
    %c0_0 = arith.constant 0 : index
    %c0_1 = arith.constant 0 : index
    %0 = vector.load %arg2[%c0, %c0_0, %c0_1] : memref<1x17x48xbf16, #tpu.memory_space<vmem>>, vector<1x17x48xbf16>
    %1 = vector.shape_cast %0 : vector<1x17x48xbf16> to vector<17x48xbf16>
    %c0_2 = arith.constant 0 : index
    %c0_3 = arith.constant 0 : index
    %2 = vector.load %arg3[%c0_2, %c0_3] : memref<48x128xbf16, #tpu.memory_space<vmem>>, vector<48x128xbf16>
    %cst = arith.constant dense<0.000000e+00> : vector<17x128xf32>
    %3 = tpu.matmul %1, %2, %cst {dimension_numbers = #tpu.dot_dimension_numbers<[1], [0], [0], [1], [0, 0, 1, 1], [], []>} : vector<17x48xbf16>, vector<48x128xbf16>, vector<17x128xf32> -> vector<17x128xf32>
    %c0_4 = arith.constant 0 : index
    %c0_5 = arith.constant 0 : index
    %c0_6 = arith.constant 0 : index
    %4 = vector.load %arg4[%c0_4, %c0_5, %c0_6] : memref<1x17x128xf32, #tpu.memory_space<vmem>>, vector<1x17x128xf32>
    %5 = vector.shape_cast %4 : vector<1x17x128xf32> to vector<17x128xf32>
    %6 = arith.addf %3, %5 : vector<17x128xf32>
    %c0_7 = arith.constant 0 : index
    %c0_8 = arith.constant 0 : index
    %c0_9 = arith.constant 0 : index
    %7 = vector.load %arg5[%c0_7, %c0_8, %c0_9] : memref<1x17x128xf32, #tpu.memory_space<vmem>>, vector<1x17x128xf32>
    %8 = vector.shape_cast %7 : vector<1x17x128xf32> to vector<17x128xf32>
    %9 = vector.shape_cast %6 : vector<17x128xf32> to vector<1x17x128xf32>
    tpu.vector_store %arg5[%c0_7, %c0_8, %c0_9], %9 {strides = array<i32>} : memref<1x17x128xf32, #tpu.memory_space<vmem>>, vector<1x17x128xf32>,
    return
  }
  func.func @transform_0(%arg0: i32, %arg1: i32) -> (i32, i32, i32) {
    %c0_i32 = arith.constant 0 : i32
    %c0_i32_0 = arith.constant 0 : i32
    return %arg0, %arg1, %c0_i32 : i32, i32, i32
  }
  func.func @transform_1(%arg0: i32, %arg1: i32) -> (i32, i32) {
    %c0_i32 = arith.constant 0 : i32
    %c0_i32_0 = arith.constant 0 : i32
    %c0_i32_1 = arith.constant 0 : i32
    return %c0_i32, %c0_i32_0 : i32, i32
  }
  func.func @transform_2(%arg0: i32, %arg1: i32) -> (i32, i32, i32) {
    %c0_i32 = arith.constant 0 : i32
    %c0_i32_0 = arith.constant 0 : i32
    %c0_i32_1 = arith.constant 0 : i32
    return %c0_i32, %arg1, %c0_i32_0 : i32, i32, i32
  }
  func.func @transform_3(%arg0: i32, %arg1: i32) -> (i32, i32, i32) {
    %c0_i32 = arith.constant 0 : i32
    %c0_i32_0 = arith.constant 0 : i32
    return %arg0, %arg1, %c0_i32 : i32, i32, i32
  }
}

</mosaic_0001>

<llo_original>
// kernel: embeddings_forward.1
$region0: #{embeddings_forward.1}
  #allocation0 [shape = 'u32[]', space=smem, size = 0x4, offset = 0x4, fixed_abs, tag = 'smem constant byte address 0x4 - core index']
  #allocation1 [shape = 'u32[144,128]{1,0:T(1,128)}', space=vmem, size = 0x12000, scoped, tag = 'internal scratch']
  %s0 = inlined_call_operand.vmem [shape: bf16[2,17,48], index: 0, kind: input, shape index: {}]
  %s1 = inlined_call_operand.vmem [shape: bf16[48,128], index: 1, kind: input, shape index: {}]
  %s2 = inlined_call_operand.vmem [shape: f32[1,17,128], index: 2, kind: input, shape index: {}]
  %s3 = inlined_call_operand.vmem [shape: f32[2,17,128], index: 3, kind: output, shape index: {}]
  %s4 = sld [smem:[#allocation0]]
  $region45: #{embeddings_forward.1} parent=0
    _
  %s6 = ssub.s32 1, %s4
  %s7 = scalar_select 0, %s6, %s4
  loop: start=0, step=1, limit=4
  $region2: #{embeddings_forward.1} parent=0 // loop_pre_header
    _
  $region3: #{embeddings_forward.1} parent=0 // loop_header
    %s9 = sphi 0, %s13
    %p10 = scmp.ge.s32.totalorder %s9, 4
    %s16 = sphi 0, %s28
    %s17 = sphi 0, %s24
    %s18 = sphi 0, %s16
    %s19 = sphi 0, %s17
    %s20 = sphi 0, %s18
    %s21 = sphi 0, %s19
    %s33 = sphi 0, %s35
    %s36 = sphi 0, %s33
    %s37 = sphi 0, %s36
    %s53 = sphi 0, %s37
    %s57 = sphi 0, %s57
    %s59 = sphi 0, %s57
    %s60 = sphi 0, %s59
    %s74 = sphi 0, %s60
    %s80 = sphi 0, %s82
    %s83 = sphi 0, %s80
    %s84 = sphi 0, %s83
    %s100 = sphi 0, %s84
    %s108 = sphi 0, %s110
    %s111 = sphi 0, %s108
    %s112 = sphi 0, %s111
    %s128 = sphi 0, %s112
  $region4: #{embeddings_forward.1} parent=0 // loop_header_branch
    %12 = sbr.rel (%p10) target = $region8
  $region5: #{embeddings_forward.1} parent=0 // loop_body
    %s14 = ssub.s32 %s9, 1
    %s15 = ssub.s32 %s9, 2
    %s22 = sadd.s32 1, %s17
    %p23 = scmp.ge.s32.totalorder %s22, 1
    %s24 = scalar_select %p23, 0, %s22
    %s25 = sadd.s32 1, %s16
    %s26 = scalar_select %p23, %s25, %s16
    %p27 = scmp.ge.s32.totalorder %s26, 2
    %s28 = scalar_select %p27, 0, %s26
    %s29 = ssub.s32 %s16, %s28
    %s30 = ssub.s32 %s17, %s24
    %s31 = sor.u32 %s29, %s30
    %p32 = scmp.eq.s32.totalorder %s31, 0
    %s34 = sadd.s32 %s33, 1
    %s35 = scalar_select %p32, %s33, %s34
    %p38 = pneg %p32
    %p39 = scmp.eq.s32.totalorder %s9, 1
    %p40 = por %p38, %p39
    %p41 = scmp.ne.s32.totalorder %s33, %s36
    %p42 = scmp.eq.s32.totalorder %s9, 0
    %p43 = por %p41, %p42
    %p44 = scmp.ne.s32.totalorder %s33, %s36
    %p45 = scmp.eq.s32.totalorder %s14, 1
    %p46 = por %p44, %p45
    %p47 = scmp.ne.s32.totalorder %s36, %s37
    %p48 = scmp.eq.s32.totalorder %s14, 0
    %p49 = por %p47, %p48
    %p50 = scmp.ne.s32.totalorder %s36, %s37
    %p51 = scmp.eq.s32.totalorder %s15, 1
    %p52 = por %p50, %p51
    %p54 = scmp.ne.s32.totalorder %s37, %s53
    %p55 = scmp.eq.s32.totalorder %s15, 0
    %p56 = por %p54, %p55
    %s58 = sadd.s32 %s57, 1
    %p61 = scmp.eq.s32.totalorder %s9, 1
    %p62 = scmp.ne.s32.totalorder %s57, %s59
    %p63 = scmp.eq.s32.totalorder %s9, 0
    %p64 = por %p62, %p63
    %p65 = scmp.ne.s32.totalorder %s57, %s59
    %p66 = scmp.eq.s32.totalorder %s14, 1
    %p67 = por %p65, %p66
    %p68 = scmp.ne.s32.totalorder %s59, %s60
    %p69 = scmp.eq.s32.totalorder %s14, 0
    %p70 = por %p68, %p69
    %p71 = scmp.ne.s32.totalorder %s59, %s60
    %p72 = scmp.eq.s32.totalorder %s15, 1
    %p73 = por %p71, %p72
    %p75 = scmp.ne.s32.totalorder %s60, %s74
    %p76 = scmp.eq.s32.totalorder %s15, 0
    %p77 = por %p75, %p76
    %s78 = ssub.s32 %s17, %s24
    %p79 = scmp.eq.s32.totalorder %s78, 0
    %s81 = sadd.s32 %s80, 1
    %s82 = scalar_select %p79, %s80, %s81
    %p85 = pneg %p79
    %p86 = scmp.eq.s32.totalorder %s9, 1
    %p87 = por %p85, %p86
    %p88 = scmp.ne.s32.totalorder %s80, %s83
    %p89 = scmp.eq.s32.totalorder %s9, 0
    %p90 = por %p88, %p89
    %p91 = scmp.ne.s32.totalorder %s80, %s83
    %p92 = scmp.eq.s32.totalorder %s14, 1
    %p93 = por %p91, %p92
    %p94 = scmp.ne.s32.totalorder %s83, %s84
    %p95 = scmp.eq.s32.totalorder %s14, 0
    %p96 = por %p94, %p95
    %p97 = scmp.ne.s32.totalorder %s83, %s84
    %p98 = scmp.eq.s32.totalorder %s15, 1
    %p99 = por %p97, %p98
    %p101 = scmp.ne.s32.totalorder %s84, %s100
    %p102 = scmp.eq.s32.totalorder %s15, 0
    %p103 = por %p101, %p102
    %s104 = ssub.s32 %s16, %s28
    %s105 = ssub.s32 %s17, %s24
    %s106 = sor.u32 %s104, %s105
    %p107 = scmp.eq.s32.totalorder %s106, 0
    %s109 = sadd.s32 %s108, 1
    %s110 = scalar_select %p107, %s108, %s109
    %p113 = pneg %p107
    %p114 = scmp.eq.s32.totalorder %s9, 1
    %p115 = por %p113, %p114
    %p116 = scmp.ne.s32.totalorder %s108, %s111
    %p117 = scmp.eq.s32.totalorder %s9, 0
    %p118 = por %p116, %p117
    %p119 = scmp.ne.s32.totalorder %s108, %s111
    %p120 = scmp.eq.s32.totalorder %s14, 1
    %p121 = por %p119, %p120
    %p122 = scmp.ne.s32.totalorder %s111, %s112
    %p123 = scmp.eq.s32.totalorder %s14, 0
    %p124 = por %p122, %p123
    %p125 = scmp.ne.s32.totalorder %s111, %s112
    %p126 = scmp.eq.s32.totalorder %s15, 1
    %p127 = por %p125, %p126
    %p129 = scmp.ne.s32.totalorder %s112, %s128
    %p130 = scmp.eq.s32.totalorder %s15, 0
    %p131 = por %p129, %p130
    %p132 = scmp.le.s32.totalorder 1, %s9
    %p133 = scmp.lt.s32.totalorder %s9, 3
    %p134 = pnand %p132, %p133
    %p135 = pneg %p134
    // Predicated region
    $region9: #{embeddings_forward.1} parent=5 // pred_check
      _
    $region10: #{embeddings_forward.1} parent=5 // pred_check_branch
      %137 = sbr.rel (%p134) target = $region12
    $region11: #{embeddings_forward.1} parent=5 // pred_region
      %s138 = ssub.s32 %s9, 1
      // Predicated region
      $region13: #{embeddings_forward.1} parent=11 // pred_check
        %p139 = pneg %p70
      $region14: #{embeddings_forward.1} parent=11 // pred_check_branch
        %141 = sbr.rel (%p139) target = $region16
      $region15: #{embeddings_forward.1} parent=11 // pred_region
        _
      $region16: #{embeddings_forward.1} parent=11 // pred_fallthru
        _
      // Predicated region
      $region17: #{embeddings_forward.1} parent=11 // pred_check
        %p142 = pneg %p96
      $region18: #{embeddings_forward.1} parent=11 // pred_check_branch
        %144 = sbr.rel (%p142) target = $region20
      $region19: #{embeddings_forward.1} parent=11 // pred_region
        %s145 = smul.u32 3, %s19
        %p146 = scmp.lt.s32.totalorder %s145, 2
        %s147 = scalar_select %p146, %s145, 2
        %s148 = smul.addr %s147, 8
        %s149 = scalar_lea.vmem %s2, %s148
        %s150 = smul.u32 3, %s19
      $region20: #{embeddings_forward.1} parent=11 // pred_fallthru
        _
    $region12: #{embeddings_forward.1} parent=5 // pred_fallthru
      _
    %p151 = scmp.lt.s32.totalorder %s9, 2
    // Predicated region
    $region21: #{embeddings_forward.1} parent=5 // pred_check
      %p152 = pneg %p151
    $region22: #{embeddings_forward.1} parent=5 // pred_check_branch
      %154 = sbr.rel (%p152) target = $region24
    $region23: #{embeddings_forward.1} parent=5 // pred_region
      // Predicated region
      $region25: #{embeddings_forward.1} parent=23 // pred_check
        %p155 = pneg %p43
      $region26: #{embeddings_forward.1} parent=23 // pred_check_branch
        %157 = sbr.rel (%p155) target = $region28
      $region27: #{embeddings_forward.1} parent=23 // pred_region
        %s158 = smul.u32 3, %s17
        %p159 = scmp.lt.s32.totalorder %s16, 1
        %s160 = scalar_select %p159, %s16, 1
        %p161 = scmp.lt.s32.totalorder %s158, 2
        %s162 = scalar_select %p161, %s158, 2
        %s163 = smul.addr %s160, 3
        %s164 = sadd.s32 %s162, %s163
        %s165 = smul.addr %s164, 4
        %s166 = scalar_lea.vmem %s0, %s165
        %s167 = smul.u32 3, %s17
      $region28: #{embeddings_forward.1} parent=23 // pred_fallthru
        _
    $region24: #{embeddings_forward.1} parent=5 // pred_fallthru
      _
    %p168 = scmp.le.s32.totalorder 1, %s9
    %p169 = scmp.lt.s32.totalorder %s9, 3
    %p170 = pnand %p168, %p169
    %p171 = pneg %p170
    // Predicated region
    $region29: #{embeddings_forward.1} parent=5 // pred_check
      _
    $region30: #{embeddings_forward.1} parent=5 // pred_check_branch
      %173 = sbr.rel (%p170) target = $region32
    $region31: #{embeddings_forward.1} parent=5 // pred_region
      %s174 = ssub.s32 %s9, 1
      %s175 = smul.u32 3, %s19
      %p176 = scmp.lt.s32.totalorder %s18, 1
      %s177 = scalar_select %p176, %s18, 1
      %p178 = scmp.lt.s32.totalorder %s175, 2
      %s179 = scalar_select %p178, %s175, 2
      %s180 = smul.addr %s177, 3
      %s181 = sadd.s32 %s179, %s180
      %s182 = smul.addr %s181, 4
      %s183 = scalar_lea.vmem %s0, %s182
      %p184 = pneg %p49
      %p185 = pneg %p46
      %p186 = pneg %p70
      %p187 = pneg %p67
      %s188 = smul.u32 3, %s19
      %p189 = scmp.lt.s32.totalorder %s188, 2
      %s190 = scalar_select %p189, %s188, 2
      %s191 = smul.addr %s190, 8
      %s192 = scalar_lea.vmem %s2, %s191
      %p193 = pneg %p96
      %p194 = pneg %p93
      %p195 = pneg %p124
      %p196 = pneg %p121
      %s197 = smul.u32 3, %s19
      %p198 = scmp.lt.s32.totalorder %s18, 1
      %s199 = scalar_select %p198, %s18, 1
      %p200 = scmp.lt.s32.totalorder %s197, 2
      %s201 = scalar_select %p200, %s197, 2
      %s202 = smul.addr %s199, 3
      %s203 = sadd.s32 %s201, %s202
      %s204 = smul.addr %s203, 8
      %s205 = scalar_lea.vmem %s3, %s204
      %s206 = smul.u32 3, %s19
      %p207 = scmp.lt.s32.totalorder %s18, 1
      %s208 = scalar_select %p207, %s18, 1
      %p209 = scmp.lt.s32.totalorder %s206, 2
      %s210 = scalar_select %p209, %s206, 2
      %s211 = smul.addr %s208, 3
      %s212 = sadd.s32 %s210, %s211
      %s213 = smul.addr %s212, 4
      %s214 = scalar_lea.vmem %s0, %s213
      %s215 = smul.u32 3, %s19
      %s216 = smul.u32 3, %s19
      %p217 = scmp.lt.s32.totalorder %s216, 2
      %s218 = scalar_select %p217, %s216, 2
      %s219 = smul.addr %s218, 8
      %s220 = scalar_lea.vmem %s2, %s219
      %s221 = smul.u32 3, %s19
      %s222 = smul.u32 3, %s19
      %p223 = scmp.lt.s32.totalorder %s18, 1
      %s224 = scalar_select %p223, %s18, 1
      %p225 = scmp.lt.s32.totalorder %s222, 2
      %s226 = scalar_select %p225, %s222, 2
      %s227 = smul.addr %s224, 3
      %s228 = sadd.s32 %s226, %s227
      %s229 = smul.addr %s228, 8
      %s230 = scalar_lea.vmem %s3, %s229
      %s231 = smul.u32 3, %s19
      %v233 = vld [vmem:[%s214] sm:$0xf]
      %v234 = vld [vmem:[%s214 + $0x4] sm:$0xf]
      %v235 = vld [vmem:[%s214 + $0x8] sm:$0x1]
      %v236 = vld [vmem:[%s1] sm:$0xf]
      %v237 = vld [vmem:[%s1 + $0x4] sm:$0xf]
      %v238 = vld [vmem:[%s1 + $0x8] sm:$0xf]
      %v239 = vld [vmem:[%s1 + $0xc] sm:$0xf]
      %v240 = vld [vmem:[%s1 + $0x10] sm:$0xf]
      %v241 = vld [vmem:[%s1 + $0x14] sm:$0xf]
      %v242 = vld [vmem:[%s220] sm:$0xff]
      %v243 = vld [vmem:[%s220 + $0x8] sm:$0xff]
      %v244 = vld [vmem:[%s220 + $0x10] sm:$0x1]
      %v248 = vunpack.c.l.b16 %v233
      %v249 = vunpack.c.l.b16 %v234
      %v250 = vunpack.c.l.b16 %v235
      %v251 = vpack.c.b16 %v249, %v248
      %v252 = vpack.c.b16 %v250, %v250
      %v259 = vunpack.c.l.b16 %v236
      %v260 = vunpack.c.l.b16 %v237
      %v261 = vunpack.c.l.b16 %v238
      %v262 = vunpack.c.l.b16 %v239
      %v263 = vunpack.c.l.b16 %v240
      %v264 = vunpack.c.l.b16 %v241
      %v265 = vpack.c.b16 %v260, %v259
      %v266 = vpack.c.b16 %v262, %v261
      %v267 = vpack.c.b16 %v264, %v263
      %vm271 = vcmask 392192
      %v273 = vsel %vm271, %v251, 0
      %v276 = vsel %vm271, %v252, 0
      %278 = vmatprep.subr.bf16.mxu0 0
      %279 = vmatpush1.bf16.msra.mxu0 %v265
      %280 = vmatprep.subr.bf16.mxu0 0
      %281 = vmatpush1.bf16.msra.mxu0 %v266
      %282 = vmatprep.subr.bf16.mxu0 0
      %283 = vmatpush1.bf16.msra.mxu0 %v267
      %284 = vmatprep.subr.bf16.mxu0 0
      %285 = vmatpush1.bf16.msra.mxu0 0
      %286 = vmatprep.subr.bf16.mxu0 0
      %287 = vmatpush1.bf16.msra.mxu0 0
      %288 = vmatprep.subr.bf16.mxu0 0
      %289 = vmatpush1.bf16.msra.mxu0 0
      %290 = vmatprep.subr.bf16.mxu0 0
      %291 = vmatpush1.bf16.msra.mxu0 0
      %292 = vmatprep.subr.bf16.mxu0 0
      %293 = vmatpush1.bf16.msra.mxu0 0
      %294 = vmatprep.subr.bf16.mxu0 0
      %295 = vmatpush1.bf16.msra.mxu0 0
      %296 = vmatprep.subr.bf16.mxu0 0
      %297 = vmatpush1.bf16.msra.mxu0 0
      %298 = vmatprep.subr.bf16.mxu0 0
      %299 = vmatpush1.bf16.msra.mxu0 0
      %300 = vmatprep.subr.bf16.mxu0 0
      %301 = vmatpush1.bf16.msra.mxu0 0
      %302 = vmatprep.subr.bf16.mxu0 0
      %303 = vmatpush1.bf16.msra.mxu0 0
      %304 = vmatprep.subr.bf16.mxu0 0
      %305 = vmatpush1.bf16.msra.mxu0 0
      %306 = vmatprep.subr.bf16.mxu0 0
      %307 = vmatpush1.bf16.msra.mxu0 0
      %308 = vmatprep.subr.bf16.mxu0 0
      %309 = vmatpush1.bf16.msra.mxu0 0
      %310 = vmatprep.mubr.bf16.mxu0 0
      %311 = vmatmul.mubr.bf16.gmra.mrb[0].mxu0 %v273
      %v312 = vpop.f32.mrb[0].mxu0
      %v313 = vadd.f32 %v242, %v312
      %v314 = vpop.f32.mrb[0].mxu0
      %v315 = vpop.f32.mrb[0].mxu0
      %v316 = vadd.f32 %v243, %v315
      %v317 = vpop.f32.mrb[0].mxu0
      %318 = vmatprep.mubr.bf16.mxu0 0
      %319 = vmatmul.mubr.bf16.gmra.mrb[0].mxu0 %v276
      %v320 = vpop.f32.mrb[0].mxu0
      %v321 = vadd.f32 %v244, %v320
      %v322 = vpop.f32.mrb[0].mxu0
      %v323 = vpop.f32.mrb[0].mxu0
      %v324 = vpop.f32.mrb[0].mxu0
      %325 = vdwg.mxu0
      %326 = vst [vmem:[%s230] sm:$0xff] %v313
      %327 = vst [vmem:[%s230 + $0x8] sm:$0xff] %v316
      %328 = vst [vmem:[%s230 + $0x10] sm:$0x1] %v321
      %s329 = smul.u32 3, %s19
      %p330 = scmp.lt.s32.totalorder %s18, 1
      %s331 = scalar_select %p330, %s18, 1
      %p332 = scmp.lt.s32.totalorder %s329, 2
      %s333 = scalar_select %p332, %s329, 2
      %s334 = smul.addr %s331, 3
      %s335 = sadd.s32 %s333, %s334
      %s336 = smul.addr %s335, 8
      %s337 = scalar_lea.vmem %s3, %s336
      // Predicated region
      $region33: #{embeddings_forward.1} parent=31 // pred_check
        %p338 = pneg %p121
      $region34: #{embeddings_forward.1} parent=31 // pred_check_branch
        %340 = sbr.rel (%p338) target = $region36
      $region35: #{embeddings_forward.1} parent=31 // pred_region
        %s341 = smul.u32 3, %s19
      $region36: #{embeddings_forward.1} parent=31 // pred_fallthru
        _
    $region32: #{embeddings_forward.1} parent=5 // pred_fallthru
      _
    %p342 = scmp.le.s32.totalorder 2, %s9
    // Predicated region
    $region37: #{embeddings_forward.1} parent=5 // pred_check
      %p343 = pneg %p342
    $region38: #{embeddings_forward.1} parent=5 // pred_check_branch
      %345 = sbr.rel (%p343) target = $region40
    $region39: #{embeddings_forward.1} parent=5 // pred_region
      %s346 = ssub.s32 %s9, 2
      // Predicated region
      $region41: #{embeddings_forward.1} parent=39 // pred_check
        %p347 = pneg %p127
      $region42: #{embeddings_forward.1} parent=39 // pred_check_branch
        %349 = sbr.rel (%p347) target = $region44
      $region43: #{embeddings_forward.1} parent=39 // pred_region
        %s350 = smul.u32 3, %s21
        %p351 = scmp.lt.s32.totalorder %s20, 1
        %s352 = scalar_select %p351, %s20, 1
        %p353 = scmp.lt.s32.totalorder %s350, 2
        %s354 = scalar_select %p353, %s350, 2
        %s355 = smul.addr %s352, 3
        %s356 = sadd.s32 %s354, %s355
        %s357 = smul.addr %s356, 8
        %s358 = scalar_lea.vmem %s3, %s357
      $region44: #{embeddings_forward.1} parent=39 // pred_fallthru
        _
    $region40: #{embeddings_forward.1} parent=5 // pred_fallthru
      _
  $region6: #{embeddings_forward.1} parent=0 // loop_footer
    %s13 = sadd.s32 1, %s9
  $region7: #{embeddings_forward.1} parent=0 // loop_footer_branch
    %8 = sbr.rel target = $region3
  $region8: #{embeddings_forward.1} parent=0 // loop_exit
    _

</llo_original>
